<compile_context>
chip_gen: v5e
topology: v5e:2x2
jax: 0.10.0
libtpu: 0.0.40
codegen_flags: <defaults>
</compile_context>

<pallas_src>
import functools

import numpy as np
import jax
import jax.numpy as jnp
from jax.experimental import pallas as pl
from jax.experimental.pallas import tpu as pltpu


# ----------------------------------------------------------------------------
# Pallas kernel: dense chunk-id assignment from the keep mask
# ----------------------------------------------------------------------------
def _chunk_id_kernel(mask_ref, out_ref, *, span: int, orig_len: int):
    m = mask_ref[...]                                  # (TB, Lp) int32 keep mask
    TB, Lp = m.shape
    col = jax.lax.broadcasted_iota(jnp.int32, (TB, Lp), 1)

    # change[b, i] = (i == 0) or (m[i] != m[i-1]); the roll wrap at column 0
    # is masked out by the (col == 0) OR.
    m_prev = pltpu.roll(m, shift=1, axis=1)
    change = jnp.logical_or(m != m_prev, col == 0)

    # seg_start[b, i] = max{ j <= i : change[b, j] } (start of the run).
    # Hillis-Steele inclusive cumulative max over the lane axis:
    # log2(Lp) XLU rolls + VPU max/select on (TB, Lp) tiles — no (B, L, L)
    # temporaries, O(TB*Lp) VMEM.
    x = jnp.where(change, col, 0)                      # values always >= 0
    k = 1
    while k < Lp:
        rolled = pltpu.roll(x, shift=k, axis=1)
        x = jnp.maximum(x, jnp.where(col >= k, rolled, 0))
        k *= 2
    seg_start = x

    # A position starts a chunk at each run boundary and every `span` steps.
    offset = col - seg_start
    if span & (span - 1) == 0:                         # power-of-two span
        on_span = (offset & (span - 1)) == 0
    else:
        on_span = (offset % span) == 0
    chunk_start = jnp.logical_or(change, on_span)

    # Trailing-zero-run handling (reference `max(start_stop) + 1`): inspect the
    # last *real* position (orig_len - 1), not the padded tail.
    at_last = col == (orig_len - 1)
    last_is_one = jnp.max(jnp.where(at_last, m, 0), axis=1, keepdims=True) == 1
    last_seg_start = jnp.max(jnp.where(at_last, seg_start, 0), axis=1,
                             keepdims=True)
    valid = jnp.logical_and(
        col < orig_len,
        jnp.logical_or(last_is_one, col <= last_seg_start))

    # Inclusive cumulative sum of chunk starts: same log-step scan, int32 adds
    # (replaces the previous (L, L) triangular-ones MXU matmul).
    cs = jnp.logical_and(chunk_start, valid).astype(jnp.int32)
    k = 1
    while k < Lp:
        rolled = pltpu.roll(cs, shift=k, axis=1)
        cs = cs + jnp.where(col >= k, rolled, 0)
        k *= 2

    out_ref[...] = jnp.where(valid, cs - 1, -1)


@functools.partial(jax.jit, static_argnames=("span",))
def hard_span_chunk_ids(keep_mask: jax.Array, *, span: int) -> jax.Array:
    """Dense chunk-id map (batch, seq) int32; -1 marks dropped positions."""
    B, L = keep_mask.shape
    # Pad seq to a multiple of 128 (lane-dense blocks / unmasked stores) and
    # batch to a multiple of the batch tile (8-sublane multiple).
    Lp = max(128, ((L + 127) // 128) * 128)
    B8 = ((B + 7) // 8) * 8
    TB = min(B8, 64)
    Bp = ((B8 + TB - 1) // TB) * TB
    # Cast + pad are fused into this jit; padded rows/cols are zeros and the
    # kernel's `orig_len` handling keeps the reference semantics exact.
    m = jnp.pad(keep_mask.astype(jnp.int32), ((0, Bp - B), (0, Lp - L)))

    kernel = functools.partial(_chunk_id_kernel, span=int(span), orig_len=L)
    out = pl.pallas_call(
        kernel,
        out_shape=jax.ShapeDtypeStruct((Bp, Lp), jnp.int32),
        grid=(Bp // TB,),
        in_specs=[pl.BlockSpec((TB, Lp), lambda i: (i, 0))],
        out_specs=pl.BlockSpec((TB, Lp), lambda i: (i, 0)),
        compiler_params=pltpu.CompilerParams(
            dimension_semantics=("parallel",)),
    )(m)
    return out[:B, :L]


# ----------------------------------------------------------------------------
# Host glue: dense chunk-id map -> ragged list-of-tuples (module output type)
# ----------------------------------------------------------------------------
def _dense_to_ragged(chunk_ids_np):
    out = []
    for row in chunk_ids_np:
        pos = np.nonzero(row >= 0)[0]
        ids = row[pos]
        splits = np.nonzero(np.diff(ids))[0] + 1       # chunk ids non-decreasing
        out.append([tuple(int(p) for p in grp) for grp in np.split(pos, splits)])
    return out


def hard_span_chunker_forward(inp, masks_dict, *, span, mask_special_tokens=True):
    assert masks_dict is not None
    del inp  # the reference module only uses inp for its batch dimension
    key = "regular_tokens_mask" if mask_special_tokens else "padding_mask"
    keep_mask = (masks_dict[key] == 1)

    chunk_ids = jax.block_until_ready(hard_span_chunk_ids(keep_mask, span=span))
    # TODO(synk): the ragged list-of-tuples output is inherently host-side
    # Python; it is reconstructed here (single O(L) pass per row) from the
    # dense chunk-id map computed on TPU.
    return _dense_to_ragged(np.asarray(chunk_ids))


# ----------------------------------------------------------------------------
# Pure-Python reference (verbatim port of the PyTorch forward logic)
# ----------------------------------------------------------------------------
def reference_forward(keep_mask_np, span):
    out = []
    for b in range(keep_mask_np.shape[0]):
        m = keep_mask_np[b, :]
        start_stop = [0]
        _ = [start_stop.append(i) for i in range(1, len(m)) if m[i] != m[i - 1]]
        if m[-1] == 1:
            start_stop.append(len(m))
        else:
            start_stop.append(max(start_stop) + 1)
        ordered_idxs = []
        for i in range(len(start_stop) - 1):
            start, stop = start_stop[i], start_stop[i + 1]
            L_ = list(range(start, stop + 1, span))
            if max(L_) < stop:
                L_.append(stop)
            L = [tuple(range(L_[k], L_[k + 1])) for k in range(len(L_) - 1)]
            ordered_idxs.extend(L)
        out.append(ordered_idxs)
    return out


if __name__ == "__main__":
    batch, seq, embed, span = 2, 16, 32, 3

    key = jax.random.PRNGKey(0)
    inp = jax.random.normal(key, (batch, seq, embed), dtype=jnp.float32)

    # Deterministic masks: row 0 = <cls> + 10 regular tokens + <sep> + padding,
    #                      row 1 = <cls> +  6 regular tokens + <sep> + padding.
    padding_mask = np.zeros((batch, seq), dtype=np.uint8)
    padding_mask[0, :12] = 1
    padding_mask[1, :8] = 1
    regular_tokens_mask = np.zeros((batch, seq), dtype=np.uint8)
    regular_tokens_mask[0, 1:11] = 1
    regular_tokens_mask[1, 1:7] = 1

    masks_dict = {
        "padding_mask": jnp.asarray(padding_mask),
        "regular_tokens_mask": jnp.asarray(regular_tokens_mask),
    }

    # Run the kernel once and block on the raw result.
    dense = jax.block_until_ready(
        hard_span_chunk_ids(jnp.asarray(regular_tokens_mask) == 1, span=span))

    # Full forward (both masking modes) checked against the reference port.
    got_special = hard_span_chunker_forward(
        inp, masks_dict, span=span, mask_special_tokens=True)
    want_special = reference_forward(regular_tokens_mask, span)
    assert got_special == want_special, (got_special, want_special)

    got_pad = hard_span_chunker_forward(
        inp, masks_dict, span=span, mask_special_tokens=False)
    want_pad = reference_forward(padding_mask, span)
    assert got_pad == want_pad, (got_pad, want_pad)

    # Extra edge cases: power-of-two span (bitwise-AND path) and a row whose
    # last real position is 1 (exercises the seq-padding boundary handling).
    edge_mask = np.zeros((batch, seq), dtype=np.uint8)
    edge_mask[0, :] = 1
    edge_mask[1, 1:7] = 1
    got_edge = _dense_to_ragged(np.asarray(jax.block_until_ready(
        hard_span_chunk_ids(jnp.asarray(edge_mask) == 1, span=4))))
    want_edge = reference_forward(edge_mask, 4)
    assert got_edge == want_edge, (got_edge, want_edge)

    print("KERNEL_OK")
</pallas_src>

<mosaic_0001>
module attributes {stable_mosaic.version = 11 : i64} {
  func.func @_chunk_id_kernel(%arg0: i32, %arg1: memref<8x128xi32, #tpu.memory_space<vmem>>, %arg2: memref<8x128xi32, #tpu.memory_space<vmem>>) attributes {dimension_semantics = [#tpu.dimension_semantics<parallel>], iteration_bounds = array<i64: 1>, scalar_prefetch = 0 : i64, scratch_operands = 0 : i64, tpu.core_type = #tpu.core_type<tc>, window_params = [{transform_indices = @transform_0, window_bounds = array<i64: 8, 128>}, {transform_indices = @transform_1, window_bounds = array<i64: 8, 128>}]} {
    %c0 = arith.constant 0 : index
    %c0_0 = arith.constant 0 : index
    %0 = vector.load %arg1[%c0, %c0_0] : memref<8x128xi32, #tpu.memory_space<vmem>>, vector<8x128xi32>
    %1 = tpu.iota {dimensions = array<i32: 1>} : vector<8x128xi32>
    %c1_i32 = arith.constant 1 : i32
    %2 = tpu.dynamic_rotate %0 by %c1_i32 dim 1 : vector<8x128xi32>, i32 -> vector<8x128xi32>
    %3 = arith.cmpi ne, %0, %2 : vector<8x128xi32>
    %c0_i32 = arith.constant 0 : i32
    %4 = vector.broadcast %c0_i32 : i32 to vector<8x128xi32>
    %5 = arith.cmpi eq, %1, %4 : vector<8x128xi32>
    %6 = arith.ori %3, %5 : vector<8x128xi1>
    %c0_i32_1 = arith.constant 0 : i32
    %7 = vector.broadcast %c0_i32_1 : i32 to vector<8x128xi32>
    %8 = arith.select %6, %1, %7 : vector<8x128xi1>, vector<8x128xi32>
    %c1_i32_2 = arith.constant 1 : i32
    %9 = tpu.dynamic_rotate %8 by %c1_i32_2 dim 1 : vector<8x128xi32>, i32 -> vector<8x128xi32>
    %c1_i32_3 = arith.constant 1 : i32
    %10 = vector.broadcast %c1_i32_3 : i32 to vector<8x128xi32>
    %11 = arith.cmpi sge, %1, %10 : vector<8x128xi32>
    %c0_i32_4 = arith.constant 0 : i32
    %12 = vector.broadcast %c0_i32_4 : i32 to vector<8x128xi32>
    %13 = arith.select %11, %9, %12 : vector<8x128xi1>, vector<8x128xi32>
    %14 = arith.maxsi %8, %13 : vector<8x128xi32>
    %c2_i32 = arith.constant 2 : i32
    %15 = tpu.dynamic_rotate %14 by %c2_i32 dim 1 : vector<8x128xi32>, i32 -> vector<8x128xi32>
    %c2_i32_5 = arith.constant 2 : i32
    %16 = vector.broadcast %c2_i32_5 : i32 to vector<8x128xi32>
    %17 = arith.cmpi sge, %1, %16 : vector<8x128xi32>
    %c0_i32_6 = arith.constant 0 : i32
    %18 = vector.broadcast %c0_i32_6 : i32 to vector<8x128xi32>
    %19 = arith.select %17, %15, %18 : vector<8x128xi1>, vector<8x128xi32>
    %20 = arith.maxsi %14, %19 : vector<8x128xi32>
    %c4_i32 = arith.constant 4 : i32
    %21 = tpu.dynamic_rotate %20 by %c4_i32 dim 1 : vector<8x128xi32>, i32 -> vector<8x128xi32>
    %c4_i32_7 = arith.constant 4 : i32
    %22 = vector.broadcast %c4_i32_7 : i32 to vector<8x128xi32>
    %23 = arith.cmpi sge, %1, %22 : vector<8x128xi32>
    %c0_i32_8 = arith.constant 0 : i32
    %24 = vector.broadcast %c0_i32_8 : i32 to vector<8x128xi32>
    %25 = arith.select %23, %21, %24 : vector<8x128xi1>, vector<8x128xi32>
    %26 = arith.maxsi %20, %25 : vector<8x128xi32>
    %c8_i32 = arith.constant 8 : i32
    %27 = tpu.dynamic_rotate %26 by %c8_i32 dim 1 : vector<8x128xi32>, i32 -> vector<8x128xi32>
    %c8_i32_9 = arith.constant 8 : i32
    %28 = vector.broadcast %c8_i32_9 : i32 to vector<8x128xi32>
    %29 = arith.cmpi sge, %1, %28 : vector<8x128xi32>
    %c0_i32_10 = arith.constant 0 : i32
    %30 = vector.broadcast %c0_i32_10 : i32 to vector<8x128xi32>
    %31 = arith.select %29, %27, %30 : vector<8x128xi1>, vector<8x128xi32>
    %32 = arith.maxsi %26, %31 : vector<8x128xi32>
    %c16_i32 = arith.constant 16 : i32
    %33 = tpu.dynamic_rotate %32 by %c16_i32 dim 1 : vector<8x128xi32>, i32 -> vector<8x128xi32>
    %c16_i32_11 = arith.constant 16 : i32
    %34 = vector.broadcast %c16_i32_11 : i32 to vector<8x128xi32>
    %35 = arith.cmpi sge, %1, %34 : vector<8x128xi32>
    %c0_i32_12 = arith.constant 0 : i32
    %36 = vector.broadcast %c0_i32_12 : i32 to vector<8x128xi32>
    %37 = arith.select %35, %33, %36 : vector<8x128xi1>, vector<8x128xi32>
    %38 = arith.maxsi %32, %37 : vector<8x128xi32>
    %c32_i32 = arith.constant 32 : i32
    %39 = tpu.dynamic_rotate %38 by %c32_i32 dim 1 : vector<8x128xi32>, i32 -> vector<8x128xi32>
    %c32_i32_13 = arith.constant 32 : i32
    %40 = vector.broadcast %c32_i32_13 : i32 to vector<8x128xi32>
    %41 = arith.cmpi sge, %1, %40 : vector<8x128xi32>
    %c0_i32_14 = arith.constant 0 : i32
    %42 = vector.broadcast %c0_i32_14 : i32 to vector<8x128xi32>
    %43 = arith.select %41, %39, %42 : vector<8x128xi1>, vector<8x128xi32>
    %44 = arith.maxsi %38, %43 : vector<8x128xi32>
    %c64_i32 = arith.constant 64 : i32
    %45 = tpu.dynamic_rotate %44 by %c64_i32 dim 1 : vector<8x128xi32>, i32 -> vector<8x128xi32>
    %c64_i32_15 = arith.constant 64 : i32
    %46 = vector.broadcast %c64_i32_15 : i32 to vector<8x128xi32>
    %47 = arith.cmpi sge, %1, %46 : vector<8x128xi32>
    %c0_i32_16 = arith.constant 0 : i32
    %48 = vector.broadcast %c0_i32_16 : i32 to vector<8x128xi32>
    %49 = arith.select %47, %45, %48 : vector<8x128xi1>, vector<8x128xi32>
    %50 = arith.maxsi %44, %49 : vector<8x128xi32>
    %51 = arith.subi %1, %50 : vector<8x128xi32>
    %c3_i32 = arith.constant 3 : i32
    %c0_i32_17 = arith.constant 0 : i32
    %52 = arith.cmpi eq, %c3_i32, %c0_i32_17 : i32
    %c1_i32_18 = arith.constant 1 : i32
    %53 = arith.select %52, %c1_i32_18, %c3_i32 : i32
    %54 = vector.broadcast %53 : i32 to vector<8x128xi32>
    %55 = arith.remsi %51, %54 : vector<8x128xi32>
    %c0_i32_19 = arith.constant 0 : i32
    %56 = vector.broadcast %c0_i32_19 : i32 to vector<8x128xi32>
    %57 = arith.cmpi ne, %55, %56 : vector<8x128xi32>
    %c0_i32_20 = arith.constant 0 : i32
    %58 = vector.broadcast %c0_i32_20 : i32 to vector<8x128xi32>
    %59 = arith.cmpi slt, %55, %58 : vector<8x128xi32>
    %c0_i32_21 = arith.constant 0 : i32
    %60 = arith.cmpi slt, %53, %c0_i32_21 : i32
    %61 = vector.broadcast %60 : i1 to vector<8x128xi1>
    %62 = vector.broadcast %61 : vector<8x128xi1> to vector<8x128xi1>
    %63 = arith.xori %59, %62 : vector<8x128xi1>
    %64 = arith.andi %63, %57 : vector<8x128xi1>
    %65 = vector.broadcast %53 : i32 to vector<8x128xi32>
    %66 = arith.addi %55, %65 : vector<8x128xi32>
    %67 = arith.select %64, %66, %55 : vector<8x128xi1>, vector<8x128xi32>
    %c0_i32_22 = arith.constant 0 : i32
    %68 = vector.broadcast %c0_i32_22 : i32 to vector<8x128xi32>
    %69 = arith.cmpi eq, %67, %68 : vector<8x128xi32>
    %70 = arith.ori %6, %69 : vector<8x128xi1>
    %c15_i32 = arith.constant 15 : i32
    %71 = vector.broadcast %c15_i32 : i32 to vector<8x128xi32>
    %72 = arith.cmpi eq, %1, %71 : vector<8x128xi32>
    %c0_i32_23 = arith.constant 0 : i32
    %73 = vector.broadcast %c0_i32_23 : i32 to vector<8x128xi32>
    %74 = arith.select %72, %0, %73 : vector<8x128xi1>, vector<8x128xi32>
    %cst = arith.constant dense<-2147483648> : vector<8xi32>
    %75 = vector.multi_reduction <maxsi>, %74, %cst [1] : vector<8x128xi32> to vector<8xi32>
    %76 = vector.shape_cast %75 : vector<8xi32> to vector<8x1xi32>
    %c1_i32_24 = arith.constant 1 : i32
    %77 = vector.broadcast %c1_i32_24 : i32 to vector<8x1xi32>
    %78 = arith.cmpi eq, %76, %77 : vector<8x1xi32>
    %c0_i32_25 = arith.constant 0 : i32
    %79 = vector.broadcast %c0_i32_25 : i32 to vector<8x128xi32>
    %80 = arith.select %72, %50, %79 : vector<8x128xi1>, vector<8x128xi32>
    %cst_26 = arith.constant dense<-2147483648> : vector<8xi32>
    %81 = vector.multi_reduction <maxsi>, %80, %cst_26 [1] : vector<8x128xi32> to vector<8xi32>
    %82 = vector.shape_cast %81 : vector<8xi32> to vector<8x1xi32>
    %c16_i32_27 = arith.constant 16 : i32
    %83 = vector.broadcast %c16_i32_27 : i32 to vector<8x128xi32>
    %84 = arith.cmpi slt, %1, %83 : vector<8x128xi32>
    %85 = vector.broadcast %82 : vector<8x1xi32> to vector<8x128xi32>
    %86 = arith.cmpi sle, %1, %85 : vector<8x128xi32>
    %87 = vector.broadcast %78 : vector<8x1xi1> to vector<8x128xi1>
    %88 = arith.ori %87, %86 : vector<8x128xi1>
    %89 = arith.andi %84, %88 : vector<8x128xi1>
    %90 = arith.andi %70, %89 : vector<8x128xi1>
    %91 = arith.extui %90 : vector<8x128xi1> to vector<8x128xi32>
    %c1_i32_28 = arith.constant 1 : i32
    %92 = tpu.dynamic_rotate %91 by %c1_i32_28 dim 1 : vector<8x128xi32>, i32 -> vector<8x128xi32>
    %c1_i32_29 = arith.constant 1 : i32
    %93 = vector.broadcast %c1_i32_29 : i32 to vector<8x128xi32>
    %94 = arith.cmpi sge, %1, %93 : vector<8x128xi32>
    %c0_i32_30 = arith.constant 0 : i32
    %95 = vector.broadcast %c0_i32_30 : i32 to vector<8x128xi32>
    %96 = arith.select %94, %92, %95 : vector<8x128xi1>, vector<8x128xi32>
    %97 = arith.addi %91, %96 : vector<8x128xi32>
    %c2_i32_31 = arith.constant 2 : i32
    %98 = tpu.dynamic_rotate %97 by %c2_i32_31 dim 1 : vector<8x128xi32>, i32 -> vector<8x128xi32>
    %c2_i32_32 = arith.constant 2 : i32
    %99 = vector.broadcast %c2_i32_32 : i32 to vector<8x128xi32>
    %100 = arith.cmpi sge, %1, %99 : vector<8x128xi32>
    %c0_i32_33 = arith.constant 0 : i32
    %101 = vector.broadcast %c0_i32_33 : i32 to vector<8x128xi32>
    %102 = arith.select %100, %98, %101 : vector<8x128xi1>, vector<8x128xi32>
    %103 = arith.addi %97, %102 : vector<8x128xi32>
    %c4_i32_34 = arith.constant 4 : i32
    %104 = tpu.dynamic_rotate %103 by %c4_i32_34 dim 1 : vector<8x128xi32>, i32 -> vector<8x128xi32>
    %c4_i32_35 = arith.constant 4 : i32
    %105 = vector.broadcast %c4_i32_35 : i32 to vector<8x128xi32>
    %106 = arith.cmpi sge, %1, %105 : vector<8x128xi32>
    %c0_i32_36 = arith.constant 0 : i32
    %107 = vector.broadcast %c0_i32_36 : i32 to vector<8x128xi32>
    %108 = arith.select %106, %104, %107 : vector<8x128xi1>, vector<8x128xi32>
    %109 = arith.addi %103, %108 : vector<8x128xi32>
    %c8_i32_37 = arith.constant 8 : i32
    %110 = tpu.dynamic_rotate %109 by %c8_i32_37 dim 1 : vector<8x128xi32>, i32 -> vector<8x128xi32>
    %c8_i32_38 = arith.constant 8 : i32
    %111 = vector.broadcast %c8_i32_38 : i32 to vector<8x128xi32>
    %112 = arith.cmpi sge, %1, %111 : vector<8x128xi32>
    %c0_i32_39 = arith.constant 0 : i32
    %113 = vector.broadcast %c0_i32_39 : i32 to vector<8x128xi32>
    %114 = arith.select %112, %110, %113 : vector<8x128xi1>, vector<8x128xi32>
    %115 = arith.addi %109, %114 : vector<8x128xi32>
    %c16_i32_40 = arith.constant 16 : i32
    %116 = tpu.dynamic_rotate %115 by %c16_i32_40 dim 1 : vector<8x128xi32>, i32 -> vector<8x128xi32>
    %c16_i32_41 = arith.constant 16 : i32
    %117 = vector.broadcast %c16_i32_41 : i32 to vector<8x128xi32>
    %118 = arith.cmpi sge, %1, %117 : vector<8x128xi32>
    %c0_i32_42 = arith.constant 0 : i32
    %119 = vector.broadcast %c0_i32_42 : i32 to vector<8x128xi32>
    %120 = arith.select %118, %116, %119 : vector<8x128xi1>, vector<8x128xi32>
    %121 = arith.addi %115, %120 : vector<8x128xi32>
    %c32_i32_43 = arith.constant 32 : i32
    %122 = tpu.dynamic_rotate %121 by %c32_i32_43 dim 1 : vector<8x128xi32>, i32 -> vector<8x128xi32>
    %c32_i32_44 = arith.constant 32 : i32
    %123 = vector.broadcast %c32_i32_44 : i32 to vector<8x128xi32>
    %124 = arith.cmpi sge, %1, %123 : vector<8x128xi32>
    %c0_i32_45 = arith.constant 0 : i32
    %125 = vector.broadcast %c0_i32_45 : i32 to vector<8x128xi32>
    %126 = arith.select %124, %122, %125 : vector<8x128xi1>, vector<8x128xi32>
    %127 = arith.addi %121, %126 : vector<8x128xi32>
    %c64_i32_46 = arith.constant 64 : i32
    %128 = tpu.dynamic_rotate %127 by %c64_i32_46 dim 1 : vector<8x128xi32>, i32 -> vector<8x128xi32>
    %c64_i32_47 = arith.constant 64 : i32
    %129 = vector.broadcast %c64_i32_47 : i32 to vector<8x128xi32>
    %130 = arith.cmpi sge, %1, %129 : vector<8x128xi32>
    %c0_i32_48 = arith.constant 0 : i32
    %131 = vector.broadcast %c0_i32_48 : i32 to vector<8x128xi32>
    %132 = arith.select %130, %128, %131 : vector<8x128xi1>, vector<8x128xi32>
    %133 = arith.addi %127, %132 : vector<8x128xi32>
    %c1_i32_49 = arith.constant 1 : i32
    %134 = vector.broadcast %c1_i32_49 : i32 to vector<8x128xi32>
    %135 = arith.subi %133, %134 : vector<8x128xi32>
    %c-1_i32 = arith.constant -1 : i32
    %136 = vector.broadcast %c-1_i32 : i32 to vector<8x128xi32>
    %137 = arith.select %89, %135, %136 : vector<8x128xi1>, vector<8x128xi32>
    %c0_50 = arith.constant 0 : index
    %c0_51 = arith.constant 0 : index
    %138 = vector.load %arg2[%c0_50, %c0_51] : memref<8x128xi32, #tpu.memory_space<vmem>>, vector<8x128xi32>
    tpu.vector_store %arg2[%c0_50, %c0_51], %137 {strides = array<i32>} : memref<8x128xi32, #tpu.memory_space<vmem>>, vector<8x128xi32>,
    return
  }
  func.func @transform_0(%arg0: i32) -> (i32, i32) {
    %c0_i32 = arith.constant 0 : i32
    %c0_i32_0 = arith.constant 0 : i32
    return %arg0, %c0_i32 : i32, i32
  }
  func.func @transform_1(%arg0: i32) -> (i32, i32) {
    %c0_i32 = arith.constant 0 : i32
    %c0_i32_0 = arith.constant 0 : i32
    return %arg0, %c0_i32 : i32, i32
  }
}

</mosaic_0001>

<llo_original>
// kernel: hard_span_chunk_ids.1
$region0: #{hard_span_chunk_ids.1}
  #allocation0 [shape = 'u32[]', space=smem, size = 0x4, offset = 0x4, fixed_abs, tag = 'smem constant byte address 0x4 - core index']
  #allocation1 [shape = 'u32[72,128]{1,0:T(1,128)}', space=vmem, size = 0x9000, scoped, tag = 'internal scratch']
  %s0 = inlined_call_operand.vmem [shape: s32[8,128], index: 0, kind: input, shape index: {}]
  %s1 = inlined_call_operand.vmem [shape: s32[8,128], index: 1, kind: output, shape index: {}]
  %s2 = sld [smem:[#allocation0]]
  $region14: #{hard_span_chunk_ids.1} parent=0
    _
  %s4 = ssub.s32 1, %s2
  %s5 = scalar_select 0, %s4, %s2
  // Predicated region
  $region2: #{hard_span_chunk_ids.1} parent=0 // pred_check
    _
  $region3: #{hard_span_chunk_ids.1} parent=0 // pred_check_branch
    %7 = sbr.rel (0) target = $region5
  $region4: #{hard_span_chunk_ids.1} parent=0 // pred_region
    _
  $region5: #{hard_span_chunk_ids.1} parent=0 // pred_fallthru
    _
  %v8 = vld [vmem:[%s0] sm:$0xff]
  %v9 = vlaneseq
  %v10 = vand.u32 %v9, 127
  %11 = vrot.lane.b32.xlu0 %v8, 1
  %v12 = vpop.permute.xlu0 %11
  %vm13 = vcmp.ne.s32.totalorder %v8, %v12
  %vm14 = vcmp.eq.s32.totalorder %v10, 0
  %vm15 = vmor %vm13, %vm14
  %v16 = vsel %vm15, %v10, 0
  %17 = vrot.lane.b32.xlu0 %v16, 1
  %v18 = vpop.permute.xlu0 %17
  %vm19 = vcmp.ge.s32.totalorder %v10, 1
  %v20 = vsel %vm19, %v18, 0
  %vm21 = vcmp.gt.s32.totalorder %v16, %v20
  %v22 = vsel %vm21, %v16, %v20
  %23 = vrot.lane.b32.xlu0 %v22, 2
  %v24 = vpop.permute.xlu0 %23
  %vm25 = vcmp.ge.s32.totalorder %v10, 2
  %v26 = vsel %vm25, %v24, 0
  %vm27 = vcmp.gt.s32.totalorder %v22, %v26
  %v28 = vsel %vm27, %v22, %v26
  %29 = vrot.lane.b32.xlu0 %v28, 4
  %v30 = vpop.permute.xlu0 %29
  %vm31 = vcmp.ge.s32.totalorder %v10, 4
  %v32 = vsel %vm31, %v30, 0
  %vm33 = vcmp.gt.s32.totalorder %v28, %v32
  %v34 = vsel %vm33, %v28, %v32
  %35 = vrot.lane.b32.xlu0 %v34, 8
  %v36 = vpop.permute.xlu0 %35
  %vm37 = vcmp.ge.s32.totalorder %v10, 8
  %v38 = vsel %vm37, %v36, 0
  %vm39 = vcmp.gt.s32.totalorder %v34, %v38
  %v40 = vsel %vm39, %v34, %v38
  %41 = vrot.lane.b32.xlu0 %v40, 16
  %v42 = vpop.permute.xlu0 %41
  %vm43 = vcmp.ge.s32.totalorder %v10, 16
  %v44 = vsel %vm43, %v42, 0
  %vm45 = vcmp.gt.s32.totalorder %v40, %v44
  %v46 = vsel %vm45, %v40, %v44
  %47 = vrot.lane.b32.xlu0 %v46, 32
  %v48 = vpop.permute.xlu0 %47
  %vm49 = vcmp.ge.s32.totalorder %v10, 32
  %v50 = vsel %vm49, %v48, 0
  %vm51 = vcmp.gt.s32.totalorder %v46, %v50
  %v52 = vsel %vm51, %v46, %v50
  %53 = vrot.lane.b32.xlu0 %v52, 64
  %v54 = vpop.permute.xlu0 %53
  %vm55 = vcmp.ge.s32.totalorder %v10, 64
  %v56 = vsel %vm55, %v54, 0
  %vm57 = vcmp.gt.s32.totalorder %v52, %v56
  %v58 = vsel %vm57, %v52, %v56
  %v59 = vsub.s32 %v10, %v58
  %vm60 = vcmp.lt.s32.totalorder %v59, 0
  %v61 = vsub.s32 0, %v59
  %v62 = vsel %vm60, %v61, %v59
  %v63 = vand.u32 %v62, 65535
  %v64 = vshrl.u32 %v62, 16
  %v66 = vmul.u32 %v63, 43691
  %v67 = vmul.u32 %v63, 43690
  %v68 = vmul.u32 %v64, 43691
  %v69 = vmul.u32 %v64, 43690
  %v70 = vshll.u32 %v67, 16
  %v71 = vshrl.u32 %v67, 16
  %v72 = vshll.u32 %v68, 16
  %v73 = vshrl.u32 %v68, 16
  %vm74 = vc.u32 %v66, %v70
  %v75 = vsel %vm74, 1, 0
  %v76 = vadd.s32 %v66, %v70
  %v77 = vadd.s32 %v69, %v75
  %vm78 = vc.u32 %v76, %v72
  %v79 = vsel %vm78, 1, 0
  %v80 = vadd.s32 %v76, %v72
  %v81 = vadd.s32 %v77, %v79
  %v82 = vadd.s32 %v81, %v71
  %v83 = vadd.s32 %v82, %v73
  %v84 = vshrl.u32 %v83, 1
  %v85 = vmul.u32 %v84, 3
  %v86 = vsub.s32 %v62, %v85
  %v87 = vsub.s32 0, %v86
  %v88 = vsel %vm60, %v87, %v86
  %vm89 = vcmp.ne.s32.totalorder %v88, 0
  %vm90 = vcmp.lt.s32.totalorder %v88, 0
  %vm91 = vmand %vm90, %vm89
  %v92 = vadd.s32 %v88, 3
  %v93 = vsel %vm91, %v92, %v88
  %vm94 = vcmp.eq.s32.totalorder %v93, 0
  %vm95 = vmor %vm15, %vm94
  %vm96 = vcmp.eq.s32.totalorder %v10, 15
  %v97 = vsel %vm96, %v8, 0
  %v98 = vand.u32 %v97, 65535
  %v99 = vshra.s32 %v97, 16
  %v100 = vcvt.s32.f32 %v98
  %v101 = vcvt.s32.f32 %v99
  %102 = vmax.xlane.f32.xlu0 %v101
  %v103 = vpop.xlane.xlu0 %102
  %vm104 = vcmp.eq.f32.partialorder %v101, %v103
  %v105 = vsel %vm104, %v100, -inf
  %106 = vmax.xlane.f32.xlu0 %v105
  %v107 = vpop.xlane.xlu0 %106
  %v108 = vcvt.f32.s32 %v107
  %v109 = vcvt.f32.s32 %v103
  %v110 = vshll.u32 %v109, 16
  %v111 = vadd.s32 %v110, %v108
  %vm112 = vcmp.eq.s32.totalorder %v111, 1
  %v113 = vsel %vm96, %v58, 0
  %v114 = vand.u32 %v113, 65535
  %v115 = vshra.s32 %v113, 16
  %v116 = vcvt.s32.f32 %v114
  %v117 = vcvt.s32.f32 %v115
  %118 = vmax.xlane.f32.xlu0 %v117
  %v119 = vpop.xlane.xlu0 %118
  %vm120 = vcmp.eq.f32.partialorder %v117, %v119
  %v121 = vsel %vm120, %v116, -inf
  %122 = vmax.xlane.f32.xlu0 %v121
  %v123 = vpop.xlane.xlu0 %122
  %v124 = vcvt.f32.s32 %v123
  %v125 = vcvt.f32.s32 %v119
  %v126 = vshll.u32 %v125, 16
  %v127 = vadd.s32 %v126, %v124
  %vm128 = vcmp.lt.s32.totalorder %v10, 16
  %vm129 = vcmp.le.s32.totalorder %v10, %v127
  %v130 = vsel %vm112, 1, 0
  %vm131 = vcmp.eq.s32.totalorder %v130, 1
  %vm132 = vmor %vm131, %vm129
  %vm133 = vmand %vm128, %vm132
  %vm134 = vmand %vm95, %vm133
  %v135 = vsel %vm134, 1, 0
  %136 = vrot.lane.b32.xlu0 %v135, 1
  %v137 = vpop.permute.xlu0 %136
  %v138 = vsel %vm19, %v137, 0
  %v139 = vadd.s32 %v135, %v138
  %140 = vrot.lane.b32.xlu0 %v139, 2
  %v141 = vpop.permute.xlu0 %140
  %v142 = vsel %vm25, %v141, 0
  %v143 = vadd.s32 %v139, %v142
  %144 = vrot.lane.b32.xlu0 %v143, 4
  %v145 = vpop.permute.xlu0 %144
  %v146 = vsel %vm31, %v145, 0
  %v147 = vadd.s32 %v143, %v146
  %148 = vrot.lane.b32.xlu0 %v147, 8
  %v149 = vpop.permute.xlu0 %148
  %v150 = vsel %vm37, %v149, 0
  %v151 = vadd.s32 %v147, %v150
  %152 = vrot.lane.b32.xlu0 %v151, 16
  %v153 = vpop.permute.xlu0 %152
  %v154 = vsel %vm43, %v153, 0
  %v155 = vadd.s32 %v151, %v154
  %156 = vrot.lane.b32.xlu0 %v155, 32
  %v157 = vpop.permute.xlu0 %156
  %v158 = vsel %vm49, %v157, 0
  %v159 = vadd.s32 %v155, %v158
  %160 = vrot.lane.b32.xlu0 %v159, 64
  %v161 = vpop.permute.xlu0 %160
  %v162 = vsel %vm55, %v161, 0
  %v163 = vadd.s32 %v159, %v162
  %v164 = vsub.s32 %v163, 1
  %v165 = vsel %vm133, %v164, 4294967295
  %166 = vst [vmem:[%s1] sm:$0xff] %v165
  // Predicated region
  $region6: #{hard_span_chunk_ids.1} parent=0 // pred_check
    _
  $region7: #{hard_span_chunk_ids.1} parent=0 // pred_check_branch
    %168 = sbr.rel (0) target = $region9
  $region8: #{hard_span_chunk_ids.1} parent=0 // pred_region
    _
  $region9: #{hard_span_chunk_ids.1} parent=0 // pred_fallthru
    _
  // Predicated region
  $region10: #{hard_span_chunk_ids.1} parent=0 // pred_check
    _
  $region11: #{hard_span_chunk_ids.1} parent=0 // pred_check_branch
    %170 = sbr.rel (0) target = $region13
  $region12: #{hard_span_chunk_ids.1} parent=0 // pred_region
    _
  $region13: #{hard_span_chunk_ids.1} parent=0 // pred_fallthru
    _

</llo_original>
